<compile_context>
chip_gen: v6e
topology: v6e:2x2x1
jax: 0.10.0
libtpu: 0.0.40
codegen_flags: <defaults>
</compile_context>

<pallas_src>
import functools

import jax
import jax.numpy as jnp
from jax.experimental import pallas as pl
from jax.experimental.pallas import tpu as pltpu


def _pick_row_tile(H, W):
    """Largest divisor of H with Ht*W <= 128 (keeps output blocks lane-dense)."""
    target = max(1, 128 // max(W, 1))
    best = 1
    for d in range(1, H + 1):
        if H % d == 0 and d <= target:
            best = d
    return best


def _dense_layer_kernel(x_ref, w_ref, b_ref, o_ref, xpad_ref, *, H, W, C, O, Ht):
    """Fused 3x3 conv (pad=1) + bias + ReLU + channel-concat, one row block.

    x_ref:    (1, H, W, C)        f32  unpadded NHWC image (constant across r)
    w_ref:    (9*C, O)            bf16 kernel-ready weight matrix, k = (3*dy+dx)*C + c
    b_ref:    (1, O)              f32  bias row
    o_ref:    (1, C+O, Ht*W)      out  channel-major: rows [0,C) = x, [C,C+O) = relu(conv)
    xpad_ref: (H+2, W+2, C)       f32  VMEM scratch holding the zero-haloed image
    """
    r = pl.program_id(1)
    M = Ht * W

    # Build the zero-haloed image once per image (r == 0); the scratch persists
    # across the row-block axis, so later steps just slice it.
    @pl.when(r == 0)
    def _():
        xpad_ref[...] = jnp.zeros_like(xpad_ref)
        xpad_ref[1:H + 1, 1:W + 1, :] = x_ref[0]

    row0 = pl.multiple_of(r * Ht, Ht)
    xt = xpad_ref[pl.ds(row0, Ht + 2), :, :]                    # (Ht+2, W+2, C) f32

    # Single folded im2col slab: (M, 9*C), one bf16 cast, one MXU matmul.
    parts = []
    for dy in range(3):
        for dx in range(3):
            parts.append(xt[dy:dy + Ht, dx:dx + W, :].reshape(M, C))
    slab = jnp.concatenate(parts, axis=-1).astype(jnp.bfloat16)  # (M, 9C) bf16

    y = jnp.dot(slab, w_ref[...], preferred_element_type=jnp.float32)   # (M, O) f32
    y = jnp.maximum(y + b_ref[...], 0.0)                                 # bias + ReLU, f32

    # Direct sub-slice stores into the lane-dense channel-major output block.
    xc = xt[1:1 + Ht, 1:1 + W, :].reshape(M, C)                  # exact f32 passthrough
    o_ref[0, 0:C, :] = jnp.transpose(xc).astype(o_ref.dtype)     # (C, M)
    o_ref[0, C:C + O, :] = jnp.transpose(y).astype(o_ref.dtype)  # (O, M)


def dense_layer_forward(params, x):
    """PyTorch DenseLayer.forward: cat([x, relu(conv3x3(x))], dim=1).  x is NCHW."""
    N, C, H, W = x.shape
    w_mat = params["w_mat"]            # (9*C, O) bf16, precomputed once
    b_row = params["b_row"]            # (1, O)   f32,  precomputed once
    O = w_mat.shape[-1]

    Ht = _pick_row_tile(H, W)
    R = H // Ht

    # NHWC once at the input boundary (channels -> lane dim); NO jnp.pad here.
    x_nhwc = jnp.transpose(x, (0, 2, 3, 1))

    kernel = functools.partial(_dense_layer_kernel, H=H, W=W, C=C, O=O, Ht=Ht)
    flops = 2 * N * H * W * 9 * C * O
    bytes_accessed = (N * H * W * C * 4
                      + 9 * C * O * 2 + O * 4
                      + N * H * W * (C + O) * 4)

    out_flat = pl.pallas_call(
        kernel,
        out_shape=jax.ShapeDtypeStruct((N, C + O, H * W), x.dtype),
        grid_spec=pltpu.PrefetchScalarGridSpec(
            num_scalar_prefetch=0,
            grid=(N, R),
            in_specs=[
                # Whole image per step; block index constant across r -> one DMA/image.
                pl.BlockSpec((1, H, W, C), lambda n, r: (n, 0, 0, 0)),
                pl.BlockSpec((9 * C, O), lambda n, r: (0, 0)),
                pl.BlockSpec((1, O), lambda n, r: (0, 0)),
            ],
            # Lane-dense channel-major output block (last dim = Ht*W, multiple of 128).
            out_specs=pl.BlockSpec((1, C + O, Ht * W), lambda n, r: (n, 0, r)),
            scratch_shapes=[pltpu.VMEM((H + 2, W + 2, C), jnp.float32)],
        ),
        compiler_params=pltpu.CompilerParams(
            dimension_semantics=("parallel", "arbitrary"),
            vmem_limit_bytes=32 * 1024 * 1024),
        cost_estimate=pl.CostEstimate(
            flops=flops, transcendentals=0, bytes_accessed=bytes_accessed),
    )(x_nhwc, w_mat, b_row)

    # Output is already channel-major -> plain reshape to NCHW (no transpose pass).
    return out_flat.reshape(N, C + O, H, W)


def init_dense_layer_params(key, in_channels, out_channels):
    fan_in = in_channels * 9
    std = (1.0 / fan_in) ** 0.5
    w = jax.random.normal(key, (out_channels, in_channels, 3, 3),
                          jnp.float32) * std
    b = jnp.zeros((out_channels,), jnp.float32)
    # Kernel-ready forms built ONCE: 2-D (9*C, O) bf16 weight matrix with
    # k = (3*dy + dx)*C + c ordering (matches the in-kernel slab), + bias row.
    w_mat = (jnp.transpose(w, (2, 3, 1, 0))            # (kh, kw, C, O)
             .reshape(9 * in_channels, out_channels)
             .astype(jnp.bfloat16))
    b_row = b.reshape(1, out_channels)
    return {"w": w, "b": b, "w_mat": w_mat, "b_row": b_row}


if __name__ == "__main__":
    key = jax.random.PRNGKey(0)
    k_x, k_p = jax.random.split(key)

    N, C, H, W = 2, 4, 16, 16
    O = 32
    x = jax.random.normal(k_x, (N, C, H, W), jnp.float32)
    params = init_dense_layer_params(k_p, C, O)

    fwd = jax.jit(dense_layer_forward)
    out = fwd(params, x)
    jax.block_until_ready(out)

    # Plain-XLA reference of the PyTorch module.
    conv = jax.lax.conv_general_dilated(
        x, params["w"], window_strides=(1, 1), padding=((1, 1), (1, 1)),
        dimension_numbers=("NCHW", "OIHW", "NCHW"))
    ref = jnp.concatenate(
        [x, jnp.maximum(conv + params["b"][None, :, None, None], 0.0)], axis=1)

    assert out.shape == (N, C + O, H, W)
    assert bool(jnp.all(jnp.isfinite(out)))
    assert bool(jnp.allclose(out[:, :C], x))                    # exact passthrough
    assert bool(jnp.allclose(out, ref, atol=5e-2, rtol=5e-2))   # bf16 matmul tol
    print("KERNEL_OK")
</pallas_src>

<mosaic_0001>
module attributes {stable_mosaic.version = 11 : i64} {
  func.func @_dense_layer_kernel(%arg0: i32, %arg1: i32, %arg2: memref<1x16x16x4xf32, #tpu.memory_space<vmem>>, %arg3: memref<36x32xbf16, #tpu.memory_space<vmem>>, %arg4: memref<1x32xf32, #tpu.memory_space<vmem>>, %arg5: memref<1x36x128xf32, #tpu.memory_space<vmem>>, %arg6: memref<18x18x4xf32, #tpu.memory_space<vmem>>) attributes {dimension_semantics = [#tpu.dimension_semantics<parallel>, #tpu.dimension_semantics<arbitrary>], iteration_bounds = array<i64: 2, 2>, scalar_prefetch = 0 : i64, scratch_operands = 1 : i64, tpu.core_type = #tpu.core_type<tc>, window_params = [{transform_indices = @transform_0, window_bounds = array<i64: 1, 16, 16, 4>}, {pipeline_mode = #tpu.pipeline_mode<synchronous>, transform_indices = @transform_1, window_bounds = array<i64: 36, 32>}, {pipeline_mode = #tpu.pipeline_mode<synchronous>, transform_indices = @transform_2, window_bounds = array<i64: 1, 32>}, {transform_indices = @transform_3, window_bounds = array<i64: 1, 36, 128>}]} {
    %c0_i32 = arith.constant 0 : i32
    %0 = arith.cmpi eq, %arg1, %c0_i32 : i32
    %1 = arith.extui %0 : i1 to i32
    %c0_i32_0 = arith.constant 0 : i32
    %2 = arith.cmpi ne, %1, %c0_i32_0 : i32
    scf.if %2 {
      %cst_12 = arith.constant 0.000000e+00 : f32
      %44 = vector.broadcast %cst_12 : f32 to vector<18x18x4xf32>
      %c0_13 = arith.constant 0 : index
      %c0_14 = arith.constant 0 : index
      %c0_15 = arith.constant 0 : index
      %45 = vector.load %arg6[%c0_13, %c0_14, %c0_15] : memref<18x18x4xf32, #tpu.memory_space<vmem>>, vector<18x18x4xf32>
      tpu.vector_store %arg6[%c0_13, %c0_14, %c0_15], %44 {strides = array<i32>} : memref<18x18x4xf32, #tpu.memory_space<vmem>>, vector<18x18x4xf32>,
      %c0_16 = arith.constant 0 : index
      %c0_17 = arith.constant 0 : index
      %c0_18 = arith.constant 0 : index
      %c0_19 = arith.constant 0 : index
      %46 = vector.load %arg2[%c0_16, %c0_17, %c0_18, %c0_19] : memref<1x16x16x4xf32, #tpu.memory_space<vmem>>, vector<1x16x16x4xf32>
      %47 = vector.shape_cast %46 : vector<1x16x16x4xf32> to vector<16x16x4xf32>
      %c1 = arith.constant 1 : index
      %c1_20 = arith.constant 1 : index
      %c0_21 = arith.constant 0 : index
      %48 = vector.load %arg6[%c1, %c1_20, %c0_21] : memref<18x18x4xf32, #tpu.memory_space<vmem>>, vector<16x16x4xf32>
      tpu.vector_store %arg6[%c1, %c1_20, %c0_21], %47 {strides = array<i32>} : memref<18x18x4xf32, #tpu.memory_space<vmem>>, vector<16x16x4xf32>,
    } else {
    }
    %c8_i32 = arith.constant 8 : i32
    %3 = arith.muli %arg1, %c8_i32 : i32
    %4 = tpu.assume_multiple %3, 8 : i32
    %5 = arith.index_cast %4 : i32 to index
    %c0 = arith.constant 0 : index
    %c0_1 = arith.constant 0 : index
    %6 = vector.load %arg6[%5, %c0, %c0_1] : memref<18x18x4xf32, #tpu.memory_space<vmem>>, vector<10x18x4xf32>
    %7 = vector.extract_strided_slice %6 {offsets = [0, 0, 0], sizes = [8, 16, 4], strides = [1, 1, 1]} : vector<10x18x4xf32> to vector<8x16x4xf32>
    %8 = vector.shape_cast %7 : vector<8x16x4xf32> to vector<128x4xf32>
    %9 = vector.extract_strided_slice %6 {offsets = [0, 1, 0], sizes = [8, 16, 4], strides = [1, 1, 1]} : vector<10x18x4xf32> to vector<8x16x4xf32>
    %10 = vector.shape_cast %9 : vector<8x16x4xf32> to vector<128x4xf32>
    %11 = vector.extract_strided_slice %6 {offsets = [0, 2, 0], sizes = [8, 16, 4], strides = [1, 1, 1]} : vector<10x18x4xf32> to vector<8x16x4xf32>
    %12 = vector.shape_cast %11 : vector<8x16x4xf32> to vector<128x4xf32>
    %13 = vector.extract_strided_slice %6 {offsets = [1, 0, 0], sizes = [8, 16, 4], strides = [1, 1, 1]} : vector<10x18x4xf32> to vector<8x16x4xf32>
    %14 = vector.shape_cast %13 : vector<8x16x4xf32> to vector<128x4xf32>
    %15 = vector.extract_strided_slice %6 {offsets = [1, 1, 0], sizes = [8, 16, 4], strides = [1, 1, 1]} : vector<10x18x4xf32> to vector<8x16x4xf32>
    %16 = vector.shape_cast %15 : vector<8x16x4xf32> to vector<128x4xf32>
    %17 = vector.extract_strided_slice %6 {offsets = [1, 2, 0], sizes = [8, 16, 4], strides = [1, 1, 1]} : vector<10x18x4xf32> to vector<8x16x4xf32>
    %18 = vector.shape_cast %17 : vector<8x16x4xf32> to vector<128x4xf32>
    %19 = vector.extract_strided_slice %6 {offsets = [2, 0, 0], sizes = [8, 16, 4], strides = [1, 1, 1]} : vector<10x18x4xf32> to vector<8x16x4xf32>
    %20 = vector.shape_cast %19 : vector<8x16x4xf32> to vector<128x4xf32>
    %21 = vector.extract_strided_slice %6 {offsets = [2, 1, 0], sizes = [8, 16, 4], strides = [1, 1, 1]} : vector<10x18x4xf32> to vector<8x16x4xf32>
    %22 = vector.shape_cast %21 : vector<8x16x4xf32> to vector<128x4xf32>
    %23 = vector.extract_strided_slice %6 {offsets = [2, 2, 0], sizes = [8, 16, 4], strides = [1, 1, 1]} : vector<10x18x4xf32> to vector<8x16x4xf32>
    %24 = vector.shape_cast %23 : vector<8x16x4xf32> to vector<128x4xf32>
    %25 = tpu.concatenate %8, %10, %12, %14, %16, %18, %20, %22, %24 in 1 : vector<128x4xf32>, vector<128x4xf32>, vector<128x4xf32>, vector<128x4xf32>, vector<128x4xf32>, vector<128x4xf32>, vector<128x4xf32>, vector<128x4xf32>, vector<128x4xf32> -> vector<128x36xf32>
    %26 = arith.truncf %25 : vector<128x36xf32> to vector<128x36xbf16>
    %c0_2 = arith.constant 0 : index
    %c0_3 = arith.constant 0 : index
    %27 = vector.load %arg3[%c0_2, %c0_3] : memref<36x32xbf16, #tpu.memory_space<vmem>>, vector<36x32xbf16>
    %cst = arith.constant dense<0.000000e+00> : vector<128x32xf32>
    %28 = tpu.matmul %26, %27, %cst {dimension_numbers = #tpu.dot_dimension_numbers<[1], [0], [0], [1], [0, 0, 1, 1], [], []>} : vector<128x36xbf16>, vector<36x32xbf16>, vector<128x32xf32> -> vector<128x32xf32>
    %c0_4 = arith.constant 0 : index
    %c0_5 = arith.constant 0 : index
    %29 = vector.load %arg4[%c0_4, %c0_5] : memref<1x32xf32, #tpu.memory_space<vmem>>, vector<1x32xf32>
    %30 = vector.broadcast %29 : vector<1x32xf32> to vector<128x32xf32>
    %31 = arith.addf %28, %30 : vector<128x32xf32>
    %cst_6 = arith.constant 0.000000e+00 : f32
    %32 = vector.broadcast %cst_6 : f32 to vector<128x32xf32>
    %33 = arith.maximumf %31, %32 : vector<128x32xf32>
    %34 = vector.extract_strided_slice %6 {offsets = [1, 1, 0], sizes = [8, 16, 4], strides = [1, 1, 1]} : vector<10x18x4xf32> to vector<8x16x4xf32>
    %35 = vector.shape_cast %34 : vector<8x16x4xf32> to vector<128x4xf32>
    %36 = tpu.transpose %35, [1, 0] : vector<128x4xf32> -> vector<4x128xf32>
    %c0_7 = arith.constant 0 : index
    %c0_8 = arith.constant 0 : index
    %c0_9 = arith.constant 0 : index
    %37 = vector.load %arg5[%c0_7, %c0_8, %c0_9] : memref<1x36x128xf32, #tpu.memory_space<vmem>>, vector<1x4x128xf32>
    %38 = vector.shape_cast %37 : vector<1x4x128xf32> to vector<4x128xf32>
    %39 = vector.shape_cast %36 : vector<4x128xf32> to vector<1x4x128xf32>
    tpu.vector_store %arg5[%c0_7, %c0_8, %c0_9], %39 {strides = array<i32>} : memref<1x36x128xf32, #tpu.memory_space<vmem>>, vector<1x4x128xf32>,
    %40 = tpu.transpose %33, [1, 0] : vector<128x32xf32> -> vector<32x128xf32>
    %c0_10 = arith.constant 0 : index
    %c4 = arith.constant 4 : index
    %c0_11 = arith.constant 0 : index
    %41 = vector.load %arg5[%c0_10, %c4, %c0_11] : memref<1x36x128xf32, #tpu.memory_space<vmem>>, vector<1x32x128xf32>
    %42 = vector.shape_cast %41 : vector<1x32x128xf32> to vector<32x128xf32>
    %43 = vector.shape_cast %40 : vector<32x128xf32> to vector<1x32x128xf32>
    tpu.vector_store %arg5[%c0_10, %c4, %c0_11], %43 {strides = array<i32>} : memref<1x36x128xf32, #tpu.memory_space<vmem>>, vector<1x32x128xf32>,
    return
  }
  func.func @transform_0(%arg0: i32, %arg1: i32) -> (i32, i32, i32, i32) {
    %c0_i32 = arith.constant 0 : i32
    %c0_i32_0 = arith.constant 0 : i32
    %c0_i32_1 = arith.constant 0 : i32
    %c0_i32_2 = arith.constant 0 : i32
    return %arg0, %c0_i32, %c0_i32_0, %c0_i32_1 : i32, i32, i32, i32
  }
  func.func @transform_1(%arg0: i32, %arg1: i32) -> (i32, i32) {
    %c0_i32 = arith.constant 0 : i32
    %c0_i32_0 = arith.constant 0 : i32
    %c0_i32_1 = arith.constant 0 : i32
    return %c0_i32, %c0_i32_0 : i32, i32
  }
  func.func @transform_2(%arg0: i32, %arg1: i32) -> (i32, i32) {
    %c0_i32 = arith.constant 0 : i32
    %c0_i32_0 = arith.constant 0 : i32
    %c0_i32_1 = arith.constant 0 : i32
    return %c0_i32, %c0_i32_0 : i32, i32
  }
  func.func @transform_3(%arg0: i32, %arg1: i32) -> (i32, i32, i32) {
    %c0_i32 = arith.constant 0 : i32
    %c0_i32_0 = arith.constant 0 : i32
    return %arg0, %c0_i32, %arg1 : i32, i32, i32
  }
}

</mosaic_0001>

<llo_original>
// kernel: dense_layer_forward.1
$region0: #{dense_layer_forward.1}
  #allocation0 [shape = 'u32[]', space=smem, size = 0x4, offset = 0x4, fixed_abs, tag = 'smem constant byte address 0x4 - core index']
  #allocation1 [shape = 'u32[144,128]{1,0:T(1,128)}', space=vmem, size = 0x12000, scoped, tag = 'internal scratch']
  #allocation2 [shape = 'f32[18,18,4]{2,1,0:T(8,128)}', space=vmem, size = 0x36000, scoped, tag = 'scratch operand']
  %s0 = inlined_call_operand.vmem [shape: f32[2,16,16,4], index: 0, kind: input, shape index: {}]
  %s1 = inlined_call_operand.vmem [shape: bf16[36,32], index: 1, kind: input, shape index: {}]
  %s2 = inlined_call_operand.vmem [shape: f32[1,32], index: 2, kind: input, shape index: {}]
  %s3 = inlined_call_operand.vmem [shape: f32[2,36,256], index: 3, kind: output, shape index: {}]
  %s4 = sld [smem:[#allocation0]]
  $region83: #{dense_layer_forward.1} parent=0
    _
  %s6 = ssub.s32 1, %s4
  %s7 = scalar_select 0, %s6, %s4
  $region1: #{dense_layer_forward.1} parent=0
    #allocation3 [shape = 'u8[40960]{0}', space=vmem, size = 0xa000, scoped, tag = 'output window, operand 0']
    loop: start=0, step=1, limit=6
    $region2: #{dense_layer_forward.1} parent=1 // loop_pre_header
      _
    $region3: #{dense_layer_forward.1} parent=1 // loop_header
      %s9 = sphi 0, %s13
      %p10 = scmp.ge.s32.totalorder %s9, 6
      %s16 = sphi 0, %s28
      %s17 = sphi 0, %s24
      %s18 = sphi 0, %s16
      %s19 = sphi 0, %s17
      %s20 = sphi 0, %s18
      %s21 = sphi 0, %s19
      %s31 = sphi 0, %s33
      %s34 = sphi 0, %s31
      %s35 = sphi 0, %s34
      %s51 = sphi 0, %s35
      %s55 = sphi 0, %s55
      %s57 = sphi 0, %s55
      %s58 = sphi 0, %s57
      %s72 = sphi 0, %s58
      %s76 = sphi 0, %s76
      %s78 = sphi 0, %s76
      %s79 = sphi 0, %s78
      %s93 = sphi 0, %s79
      %s101 = sphi 0, %s103
      %s104 = sphi 0, %s101
      %s105 = sphi 0, %s104
      %s121 = sphi 0, %s105
    $region4: #{dense_layer_forward.1} parent=1 // loop_header_branch
      %12 = sbr.rel (%p10) target = $region8
    $region5: #{dense_layer_forward.1} parent=1 // loop_body
      %s14 = ssub.s32 %s9, 1
      %s15 = ssub.s32 %s9, 2
      %s22 = sadd.s32 1, %s17
      %p23 = scmp.ge.s32.totalorder %s22, 2
      %s24 = scalar_select %p23, 0, %s22
      %s25 = sadd.s32 1, %s16
      %s26 = scalar_select %p23, %s25, %s16
      %p27 = scmp.ge.s32.totalorder %s26, 2
      %s28 = scalar_select %p27, 0, %s26
      %s29 = ssub.s32 %s16, %s28
      %p30 = scmp.eq.s32.totalorder %s29, 0
      %s32 = sadd.s32 %s31, 1
      %s33 = scalar_select %p30, %s31, %s32
      %p36 = pneg %p30
      %p37 = scmp.eq.s32.totalorder %s9, 3
      %p38 = por %p36, %p37
      %p39 = scmp.ne.s32.totalorder %s31, %s34
      %p40 = scmp.eq.s32.totalorder %s9, 0
      %p41 = por %p39, %p40
      %p42 = scmp.ne.s32.totalorder %s31, %s34
      %p43 = scmp.eq.s32.totalorder %s14, 3
      %p44 = por %p42, %p43
      %p45 = scmp.ne.s32.totalorder %s34, %s35
      %p46 = scmp.eq.s32.totalorder %s14, 0
      %p47 = por %p45, %p46
      %p48 = scmp.ne.s32.totalorder %s34, %s35
      %p49 = scmp.eq.s32.totalorder %s15, 3
      %p50 = por %p48, %p49
      %p52 = scmp.ne.s32.totalorder %s35, %s51
      %p53 = scmp.eq.s32.totalorder %s15, 0
      %p54 = por %p52, %p53
      %s56 = sadd.s32 %s55, 1
      %p59 = scmp.eq.s32.totalorder %s9, 3
      %p60 = scmp.ne.s32.totalorder %s55, %s57
      %p61 = scmp.eq.s32.totalorder %s9, 0
      %p62 = por %p60, %p61
      %p63 = scmp.ne.s32.totalorder %s55, %s57
      %p64 = scmp.eq.s32.totalorder %s14, 3
      %p65 = por %p63, %p64
      %p66 = scmp.ne.s32.totalorder %s57, %s58
      %p67 = scmp.eq.s32.totalorder %s14, 0
      %p68 = por %p66, %p67
      %p69 = scmp.ne.s32.totalorder %s57, %s58
      %p70 = scmp.eq.s32.totalorder %s15, 3
      %p71 = por %p69, %p70
      %p73 = scmp.ne.s32.totalorder %s58, %s72
      %p74 = scmp.eq.s32.totalorder %s15, 0
      %p75 = por %p73, %p74
      %s77 = sadd.s32 %s76, 1
      %p80 = scmp.eq.s32.totalorder %s9, 3
      %p81 = scmp.ne.s32.totalorder %s76, %s78
      %p82 = scmp.eq.s32.totalorder %s9, 0
      %p83 = por %p81, %p82
      %p84 = scmp.ne.s32.totalorder %s76, %s78
      %p85 = scmp.eq.s32.totalorder %s14, 3
      %p86 = por %p84, %p85
      %p87 = scmp.ne.s32.totalorder %s78, %s79
      %p88 = scmp.eq.s32.totalorder %s14, 0
      %p89 = por %p87, %p88
      %p90 = scmp.ne.s32.totalorder %s78, %s79
      %p91 = scmp.eq.s32.totalorder %s15, 3
      %p92 = por %p90, %p91
      %p94 = scmp.ne.s32.totalorder %s79, %s93
      %p95 = scmp.eq.s32.totalorder %s15, 0
      %p96 = por %p94, %p95
      %s97 = ssub.s32 %s16, %s28
      %s98 = ssub.s32 %s17, %s24
      %s99 = sor.u32 %s97, %s98
      %p100 = scmp.eq.s32.totalorder %s99, 0
      %s102 = sadd.s32 %s101, 1
      %s103 = scalar_select %p100, %s101, %s102
      %p106 = pneg %p100
      %p107 = scmp.eq.s32.totalorder %s9, 3
      %p108 = por %p106, %p107
      %p109 = scmp.ne.s32.totalorder %s101, %s104
      %p110 = scmp.eq.s32.totalorder %s9, 0
      %p111 = por %p109, %p110
      %p112 = scmp.ne.s32.totalorder %s101, %s104
      %p113 = scmp.eq.s32.totalorder %s14, 3
      %p114 = por %p112, %p113
      %p115 = scmp.ne.s32.totalorder %s104, %s105
      %p116 = scmp.eq.s32.totalorder %s14, 0
      %p117 = por %p115, %p116
      %p118 = scmp.ne.s32.totalorder %s104, %s105
      %p119 = scmp.eq.s32.totalorder %s15, 3
      %p120 = por %p118, %p119
      %p122 = scmp.ne.s32.totalorder %s105, %s121
      %p123 = scmp.eq.s32.totalorder %s15, 0
      %p124 = por %p122, %p123
      %p125 = scmp.le.s32.totalorder 1, %s9
      %p126 = scmp.lt.s32.totalorder %s9, 5
      %p127 = pnand %p125, %p126
      %p128 = pneg %p127
      // Predicated region
      $region9: #{dense_layer_forward.1} parent=5 // pred_check
        _
      $region10: #{dense_layer_forward.1} parent=5 // pred_check_branch
        %130 = sbr.rel (%p127) target = $region12
      $region11: #{dense_layer_forward.1} parent=5 // pred_region
        %s131 = ssub.s32 %s9, 1
        // Predicated region
        $region13: #{dense_layer_forward.1} parent=11 // pred_check
          %p132 = pneg %p68
        $region14: #{dense_layer_forward.1} parent=11 // pred_check_branch
          %134 = sbr.rel (%p132) target = $region16
        $region15: #{dense_layer_forward.1} parent=11 // pred_region
          _
        $region16: #{dense_layer_forward.1} parent=11 // pred_fallthru
          _
        // Predicated region
        $region17: #{dense_layer_forward.1} parent=11 // pred_check
          %p135 = pneg %p89
        $region18: #{dense_layer_forward.1} parent=11 // pred_check_branch
          %137 = sbr.rel (%p135) target = $region20
        $region19: #{dense_layer_forward.1} parent=11 // pred_region
          _
        $region20: #{dense_layer_forward.1} parent=11 // pred_fallthru
          _
      $region12: #{dense_layer_forward.1} parent=5 // pred_fallthru
        _
      %p138 = scmp.lt.s32.totalorder %s9, 4
      // Predicated region
      $region21: #{dense_layer_forward.1} parent=5 // pred_check
        %p139 = pneg %p138
      $region22: #{dense_layer_forward.1} parent=5 // pred_check_branch
        %141 = sbr.rel (%p139) target = $region24
      $region23: #{dense_layer_forward.1} parent=5 // pred_region
        // Predicated region
        $region25: #{dense_layer_forward.1} parent=23 // pred_check
          %p142 = pneg %p41
        $region26: #{dense_layer_forward.1} parent=23 // pred_check_branch
          %144 = sbr.rel (%p142) target = $region28
        $region27: #{dense_layer_forward.1} parent=23 // pred_region
          %p145 = scmp.lt.s32.totalorder %s16, 1
          %s146 = scalar_select %p145, %s16, 1
          %s147 = smul.addr %s146, 32
          %s148 = smul.addr %s147, 8
          %s149 = scalar_lea.vmem %s0, %s148
        $region28: #{dense_layer_forward.1} parent=23 // pred_fallthru
          _
      $region24: #{dense_layer_forward.1} parent=5 // pred_fallthru
        _
      %p150 = scmp.le.s32.totalorder 1, %s9
      %p151 = scmp.lt.s32.totalorder %s9, 5
      %p152 = pnand %p150, %p151
      %p153 = pneg %p152
      // Predicated region
      $region29: #{dense_layer_forward.1} parent=5 // pred_check
        _
      $region30: #{dense_layer_forward.1} parent=5 // pred_check_branch
        %155 = sbr.rel (%p152) target = $region32
      $region31: #{dense_layer_forward.1} parent=5 // pred_region
        %s156 = ssub.s32 %s9, 1
        %p157 = scmp.lt.s32.totalorder %s18, 1
        %s158 = scalar_select %p157, %s18, 1
        %s159 = smul.addr %s158, 32
        %s160 = smul.addr %s159, 8
        %s161 = scalar_lea.vmem %s0, %s160
        %p162 = pneg %p47
        %p163 = pneg %p44
        %p164 = pneg %p68
        %p165 = pneg %p65
        %p166 = pneg %p89
        %p167 = pneg %p86
        %p168 = pneg %p117
        %p169 = pneg %p114
        %s170 = sand.u32 %s104, 1
        %s171 = sand.u32 %s104, 1
        %s172 = smul.addr %s171, 40
        %s173 = scalar_lea.vmem [#allocation3], %s172
        %p174 = scmp.lt.s32.totalorder %s18, 1
        %s175 = scalar_select %p174, %s18, 1
        %s176 = smul.addr %s175, 32
        %s177 = smul.addr %s176, 8
        %s178 = scalar_lea.vmem %s0, %s177
        %p180 = scmp.eq.s32.totalorder %s19, 0
        // Predicated region
        $region33: #{dense_layer_forward.1} parent=31 // pred_check
          %p181 = pneg %p180
        $region34: #{dense_layer_forward.1} parent=31 // pred_check_branch
          %183 = sbr.rel (%p181) target = $region36
        $region35: #{dense_layer_forward.1} parent=31 // pred_region
          %vm184 = vcmask 31744
          %185 = vst.msk [vmem:[#allocation2] sm:$0xff] %vm184, 0.0
          %186 = vst.msk [vmem:[#allocation2 + $0x8] sm:$0xff] %vm184, 0.0
          %vm187 = vcmask 25600
          %188 = vst.msk [vmem:[#allocation2 + $0x10] sm:$0x3] %vm187, 0.0
          %189 = vst.msk [vmem:[#allocation2 + $0x18] sm:$0xff] %vm184, 0.0
          %190 = vst.msk [vmem:[#allocation2 + $0x20] sm:$0xff] %vm184, 0.0
          %191 = vst.msk [vmem:[#allocation2 + $0x28] sm:$0x3] %vm187, 0.0
          %192 = vst.msk [vmem:[#allocation2 + $0x30] sm:$0xff] %vm184, 0.0
          %193 = vst.msk [vmem:[#allocation2 + $0x38] sm:$0xff] %vm184, 0.0
          %194 = vst.msk [vmem:[#allocation2 + $0x40] sm:$0x3] %vm187, 0.0
          %195 = vst.msk [vmem:[#allocation2 + $0x48] sm:$0xff] %vm184, 0.0
          %196 = vst.msk [vmem:[#allocation2 + $0x50] sm:$0xff] %vm184, 0.0
          %197 = vst.msk [vmem:[#allocation2 + $0x58] sm:$0x3] %vm187, 0.0
          %198 = vst.msk [vmem:[#allocation2 + $0x60] sm:$0xff] %vm184, 0.0
          %199 = vst.msk [vmem:[#allocation2 + $0x68] sm:$0xff] %vm184, 0.0
          %200 = vst.msk [vmem:[#allocation2 + $0x70] sm:$0x3] %vm187, 0.0
          %201 = vst.msk [vmem:[#allocation2 + $0x78] sm:$0xff] %vm184, 0.0
          %202 = vst.msk [vmem:[#allocation2 + $0x80] sm:$0xff] %vm184, 0.0
          %203 = vst.msk [vmem:[#allocation2 + $0x88] sm:$0x3] %vm187, 0.0
          %204 = vst.msk [vmem:[#allocation2 + $0x90] sm:$0xff] %vm184, 0.0
          %205 = vst.msk [vmem:[#allocation2 + $0x98] sm:$0xff] %vm184, 0.0
          %206 = vst.msk [vmem:[#allocation2 + $0xa0] sm:$0x3] %vm187, 0.0
          %207 = vst.msk [vmem:[#allocation2 + $0xa8] sm:$0xff] %vm184, 0.0
          %208 = vst.msk [vmem:[#allocation2 + $0xb0] sm:$0xff] %vm184, 0.0
          %209 = vst.msk [vmem:[#allocation2 + $0xb8] sm:$0x3] %vm187, 0.0
          %210 = vst.msk [vmem:[#allocation2 + $0xc0] sm:$0xff] %vm184, 0.0
          %211 = vst.msk [vmem:[#allocation2 + $0xc8] sm:$0xff] %vm184, 0.0
          %212 = vst.msk [vmem:[#allocation2 + $0xd0] sm:$0x3] %vm187, 0.0
          %213 = vst.msk [vmem:[#allocation2 + $0xd8] sm:$0xff] %vm184, 0.0
          %214 = vst.msk [vmem:[#allocation2 + $0xe0] sm:$0xff] %vm184, 0.0
          %215 = vst.msk [vmem:[#allocation2 + $0xe8] sm:$0x3] %vm187, 0.0
          %216 = vst.msk [vmem:[#allocation2 + $0xf0] sm:$0xff] %vm184, 0.0
          %217 = vst.msk [vmem:[#allocation2 + $0xf8] sm:$0xff] %vm184, 0.0
          %218 = vst.msk [vmem:[#allocation2 + $0x100] sm:$0x3] %vm187, 0.0
          %219 = vst.msk [vmem:[#allocation2 + $0x108] sm:$0xff] %vm184, 0.0
          %220 = vst.msk [vmem:[#allocation2 + $0x110] sm:$0xff] %vm184, 0.0
          %221 = vst.msk [vmem:[#allocation2 + $0x118] sm:$0x3] %vm187, 0.0
          %222 = vst.msk [vmem:[#allocation2 + $0x120] sm:$0xff] %vm184, 0.0
          %223 = vst.msk [vmem:[#allocation2 + $0x128] sm:$0xff] %vm184, 0.0
          %224 = vst.msk [vmem:[#allocation2 + $0x130] sm:$0x3] %vm187, 0.0
          %225 = vst.msk [vmem:[#allocation2 + $0x138] sm:$0xff] %vm184, 0.0
          %226 = vst.msk [vmem:[#allocation2 + $0x140] sm:$0xff] %vm184, 0.0
          %227 = vst.msk [vmem:[#allocation2 + $0x148] sm:$0x3] %vm187, 0.0
          %228 = vst.msk [vmem:[#allocation2 + $0x150] sm:$0xff] %vm184, 0.0
          %229 = vst.msk [vmem:[#allocation2 + $0x158] sm:$0xff] %vm184, 0.0
          %230 = vst.msk [vmem:[#allocation2 + $0x160] sm:$0x3] %vm187, 0.0
          %231 = vst.msk [vmem:[#allocation2 + $0x168] sm:$0xff] %vm184, 0.0
          %232 = vst.msk [vmem:[#allocation2 + $0x170] sm:$0xff] %vm184, 0.0
          %233 = vst.msk [vmem:[#allocation2 + $0x178] sm:$0x3] %vm187, 0.0
          %234 = vst.msk [vmem:[#allocation2 + $0x180] sm:$0xff] %vm184, 0.0
          %235 = vst.msk [vmem:[#allocation2 + $0x188] sm:$0xff] %vm184, 0.0
          %236 = vst.msk [vmem:[#allocation2 + $0x190] sm:$0x3] %vm187, 0.0
          %237 = vst.msk [vmem:[#allocation2 + $0x198] sm:$0xff] %vm184, 0.0
          %238 = vst.msk [vmem:[#allocation2 + $0x1a0] sm:$0xff] %vm184, 0.0
          %239 = vst.msk [vmem:[#allocation2 + $0x1a8] sm:$0x3] %vm187, 0.0
          %v240 = vld [vmem:[%s178] sm:$0xff]
          %v241 = vld [vmem:[%s178 + $0x8] sm:$0xff]
          %v242 = vld [vmem:[%s178 + $0x10] sm:$0xff]
          %v243 = vld [vmem:[%s178 + $0x18] sm:$0xff]
          %v244 = vld [vmem:[%s178 + $0x20] sm:$0xff]
          %v245 = vld [vmem:[%s178 + $0x28] sm:$0xff]
          %v246 = vld [vmem:[%s178 + $0x30] sm:$0xff]
          %v247 = vld [vmem:[%s178 + $0x38] sm:$0xff]
          %v248 = vld [vmem:[%s178 + $0x40] sm:$0xff]
          %v249 = vld [vmem:[%s178 + $0x48] sm:$0xff]
          %v250 = vld [vmem:[%s178 + $0x50] sm:$0xff]
          %v251 = vld [vmem:[%s178 + $0x58] sm:$0xff]
          %v252 = vld [vmem:[%s178 + $0x60] sm:$0xff]
          %v253 = vld [vmem:[%s178 + $0x68] sm:$0xff]
          %v254 = vld [vmem:[%s178 + $0x70] sm:$0xff]
          %v255 = vld [vmem:[%s178 + $0x78] sm:$0xff]
          %v256 = vld [vmem:[%s178 + $0x80] sm:$0xff]
          %v257 = vld [vmem:[%s178 + $0x88] sm:$0xff]
          %v258 = vld [vmem:[%s178 + $0x90] sm:$0xff]
          %v259 = vld [vmem:[%s178 + $0x98] sm:$0xff]
          %v260 = vld [vmem:[%s178 + $0xa0] sm:$0xff]
          %v261 = vld [vmem:[%s178 + $0xa8] sm:$0xff]
          %v262 = vld [vmem:[%s178 + $0xb0] sm:$0xff]
          %v263 = vld [vmem:[%s178 + $0xb8] sm:$0xff]
          %v264 = vld [vmem:[%s178 + $0xc0] sm:$0xff]
          %v265 = vld [vmem:[%s178 + $0xc8] sm:$0xff]
          %v266 = vld [vmem:[%s178 + $0xd0] sm:$0xff]
          %v267 = vld [vmem:[%s178 + $0xd8] sm:$0xff]
          %v268 = vld [vmem:[%s178 + $0xe0] sm:$0xff]
          %v269 = vld [vmem:[%s178 + $0xe8] sm:$0xff]
          %v270 = vld [vmem:[%s178 + $0xf0] sm:$0xff]
          %v271 = vld [vmem:[%s178 + $0xf8] sm:$0xff]
          %s272 = scalar_lea.vmem [#allocation2], 24
          %273 = vst.msk [vmem:[%s272 + $0x1] sm:$0xff] %vm184, %v240
          %274 = vst.msk [vmem:[%s272 + $0x9] sm:$0xff] %vm184, %v241
          %275 = vst.msk [vmem:[%s272 + $0x19] sm:$0xff] %vm184, %v242
          %276 = vst.msk [vmem:[%s272 + $0x21] sm:$0xff] %vm184, %v243
          %277 = vst.msk [vmem:[%s272 + $0x31] sm:$0xff] %vm184, %v244
          %278 = vst.msk [vmem:[%s272 + $0x39] sm:$0xff] %vm184, %v245
          %279 = vst.msk [vmem:[%s272 + $0x49] sm:$0xff] %vm184, %v246
          %280 = vst.msk [vmem:[%s272 + $0x51] sm:$0xff] %vm184, %v247
          %281 = vst.msk [vmem:[%s272 + $0x61] sm:$0xff] %vm184, %v248
          %282 = vst.msk [vmem:[%s272 + $0x69] sm:$0xff] %vm184, %v249
          %283 = vst.msk [vmem:[%s272 + $0x79] sm:$0xff] %vm184, %v250
          %284 = vst.msk [vmem:[%s272 + $0x81] sm:$0xff] %vm184, %v251
          %285 = vst.msk [vmem:[%s272 + $0x91] sm:$0xff] %vm184, %v252
          %286 = vst.msk [vmem:[%s272 + $0x99] sm:$0xff] %vm184, %v253
          %287 = vst.msk [vmem:[%s272 + $0xa9] sm:$0xff] %vm184, %v254
          %288 = vst.msk [vmem:[%s272 + $0xb1] sm:$0xff] %vm184, %v255
          %289 = vst.msk [vmem:[%s272 + $0xc1] sm:$0xff] %vm184, %v256
          %290 = vst.msk [vmem:[%s272 + $0xc9] sm:$0xff] %vm184, %v257
          %291 = vst.msk [vmem:[%s272 + $0xd9] sm:$0xff] %vm184, %v258
          %292 = vst.msk [vmem:[%s272 + $0xe1] sm:$0xff] %vm184, %v259
          %293 = vst.msk [vmem:[%s272 + $0xf1] sm:$0xff] %vm184, %v260
          %294 = vst.msk [vmem:[%s272 + $0xf9] sm:$0xff] %vm184, %v261
          %295 = vst.msk [vmem:[%s272 + $0x109] sm:$0xff] %vm184, %v262
          %296 = vst.msk [vmem:[%s272 + $0x111] sm:$0xff] %vm184, %v263
          %297 = vst.msk [vmem:[%s272 + $0x121] sm:$0xff] %vm184, %v264
          %298 = vst.msk [vmem:[%s272 + $0x129] sm:$0xff] %vm184, %v265
          %299 = vst.msk [vmem:[%s272 + $0x139] sm:$0xff] %vm184, %v266
          %300 = vst.msk [vmem:[%s272 + $0x141] sm:$0xff] %vm184, %v267
          %301 = vst.msk [vmem:[%s272 + $0x151] sm:$0xff] %vm184, %v268
          %302 = vst.msk [vmem:[%s272 + $0x159] sm:$0xff] %vm184, %v269
          %303 = vst.msk [vmem:[%s272 + $0x169] sm:$0xff] %vm184, %v270
          %304 = vst.msk [vmem:[%s272 + $0x171] sm:$0xff] %vm184, %v271
        $region36: #{dense_layer_forward.1} parent=31 // pred_fallthru
          _
        %s305 = smul.u32 %s19, 8
        %s306 = smul.u32 %s305, 24
        %s307 = scalar_lea.vmem [#allocation2], %s306
        %v308 = vld [vmem:[%s307] sm:$0xff]
        %v309 = vld [vmem:[%s307 + $0x8] sm:$0xff]
        %v310 = vld [vmem:[%s307 + $0x10] sm:$0x3]
        %v311 = vld [vmem:[%s307 + $0x18] sm:$0xff]
        %v312 = vld [vmem:[%s307 + $0x20] sm:$0xff]
        %v313 = vld [vmem:[%s307 + $0x28] sm:$0x3]
        %v314 = vld [vmem:[%s307 + $0x30] sm:$0xff]
        %v315 = vld [vmem:[%s307 + $0x38] sm:$0xff]
        %v316 = vld [vmem:[%s307 + $0x40] sm:$0x3]
        %v317 = vld [vmem:[%s307 + $0x48] sm:$0xff]
        %v318 = vld [vmem:[%s307 + $0x50] sm:$0xff]
        %v319 = vld [vmem:[%s307 + $0x58] sm:$0x3]
        %v320 = vld [vmem:[%s307 + $0x60] sm:$0xff]
        %v321 = vld [vmem:[%s307 + $0x68] sm:$0xff]
        %v322 = vld [vmem:[%s307 + $0x70] sm:$0x3]
        %v323 = vld [vmem:[%s307 + $0x78] sm:$0xff]
        %v324 = vld [vmem:[%s307 + $0x80] sm:$0xff]
        %v325 = vld [vmem:[%s307 + $0x88] sm:$0x3]
        %v326 = vld [vmem:[%s307 + $0x90] sm:$0xff]
        %v327 = vld [vmem:[%s307 + $0x98] sm:$0xff]
        %v328 = vld [vmem:[%s307 + $0xa0] sm:$0x3]
        %v329 = vld [vmem:[%s307 + $0xa8] sm:$0xff]
        %v330 = vld [vmem:[%s307 + $0xb0] sm:$0xff]
        %v331 = vld [vmem:[%s307 + $0xb8] sm:$0x3]
        %v332 = vld [vmem:[%s307 + $0xc0] sm:$0xff]
        %v333 = vld [vmem:[%s307 + $0xc8] sm:$0xff]
        %v334 = vld [vmem:[%s307 + $0xd0] sm:$0x3]
        %v335 = vld [vmem:[%s307 + $0xd8] sm:$0xff]
        %v336 = vld [vmem:[%s307 + $0xe0] sm:$0xff]
        %v337 = vld [vmem:[%s307 + $0xe8] sm:$0x3]
        %vm362 = vcmask 1046528
        %v363 = vrot.slane %v308, 1
        %v364 = vrot.slane %v309, 1
        %v365 = vsel %vm362, %v363, %v364
        %v366 = vrot.slane %v310, 1
        %v367 = vsel %vm362, %v364, %v366
        %v368 = vrot.slane %v311, 1
        %v369 = vrot.slane %v312, 1
        %v370 = vsel %vm362, %v368, %v369
        %v371 = vrot.slane %v313, 1
        %v372 = vsel %vm362, %v369, %v371
        %v373 = vrot.slane %v314, 1
        %v374 = vrot.slane %v315, 1
        %v375 = vsel %vm362, %v373, %v374
        %v376 = vrot.slane %v316, 1
        %v377 = vsel %vm362, %v374, %v376
        %v378 = vrot.slane %v317, 1
        %v379 = vrot.slane %v318, 1
        %v380 = vsel %vm362, %v378, %v379
        %v381 = vrot.slane %v319, 1
        %v382 = vsel %vm362, %v379, %v381
        %v383 = vrot.slane %v320, 1
        %v384 = vrot.slane %v321, 1
        %v385 = vsel %vm362, %v383, %v384
        %v386 = vrot.slane %v322, 1
        %v387 = vsel %vm362, %v384, %v386
        %v388 = vrot.slane %v323, 1
        %v389 = vrot.slane %v324, 1
        %v390 = vsel %vm362, %v388, %v389
        %v391 = vrot.slane %v325, 1
        %v392 = vsel %vm362, %v389, %v391
        %v393 = vrot.slane %v326, 1
        %v394 = vrot.slane %v327, 1
        %v395 = vsel %vm362, %v393, %v394
        %v396 = vrot.slane %v328, 1
        %v397 = vsel %vm362, %v394, %v396
        %v398 = vrot.slane %v329, 1
        %v399 = vrot.slane %v330, 1
        %v400 = vsel %vm362, %v398, %v399
        %v401 = vrot.slane %v331, 1
        %v402 = vsel %vm362, %v399, %v401
        %vm403 = vcmask 1045504
        %v404 = vrot.slane %v308, 2
        %v405 = vrot.slane %v309, 2
        %v406 = vsel %vm403, %v404, %v405
        %v407 = vrot.slane %v310, 2
        %v408 = vsel %vm403, %v405, %v407
        %v409 = vrot.slane %v311, 2
        %v410 = vrot.slane %v312, 2
        %v411 = vsel %vm403, %v409, %v410
        %v412 = vrot.slane %v313, 2
        %v413 = vsel %vm403, %v410, %v412
        %v414 = vrot.slane %v314, 2
        %v415 = vrot.slane %v315, 2
        %v416 = vsel %vm403, %v414, %v415
        %v417 = vrot.slane %v316, 2
        %v418 = vsel %vm403, %v415, %v417
        %v419 = vrot.slane %v317, 2
        %v420 = vrot.slane %v318, 2
        %v421 = vsel %vm403, %v419, %v420
        %v422 = vrot.slane %v319, 2
        %v423 = vsel %vm403, %v420, %v422
        %v424 = vrot.slane %v320, 2
        %v425 = vrot.slane %v321, 2
        %v426 = vsel %vm403, %v424, %v425
        %v427 = vrot.slane %v322, 2
        %v428 = vsel %vm403, %v425, %v427
        %v429 = vrot.slane %v323, 2
        %v430 = vrot.slane %v324, 2
        %v431 = vsel %vm403, %v429, %v430
        %v432 = vrot.slane %v325, 2
        %v433 = vsel %vm403, %v430, %v432
        %v434 = vrot.slane %v326, 2
        %v435 = vrot.slane %v327, 2
        %v436 = vsel %vm403, %v434, %v435
        %v437 = vrot.slane %v328, 2
        %v438 = vsel %vm403, %v435, %v437
        %v439 = vrot.slane %v329, 2
        %v440 = vrot.slane %v330, 2
        %v441 = vsel %vm403, %v439, %v440
        %v442 = vrot.slane %v331, 2
        %v443 = vsel %vm403, %v440, %v442
        %v447 = vrot.slane %v332, 1
        %v448 = vrot.slane %v333, 1
        %v449 = vsel %vm362, %v447, %v448
        %v450 = vrot.slane %v334, 1
        %v451 = vsel %vm362, %v448, %v450
        %v468 = vrot.slane %v332, 2
        %v469 = vrot.slane %v333, 2
        %v470 = vsel %vm403, %v468, %v469
        %v471 = vrot.slane %v334, 2
        %v472 = vsel %vm403, %v469, %v471
        %v476 = vrot.slane %v335, 1
        %v477 = vrot.slane %v336, 1
        %v478 = vsel %vm362, %v476, %v477
        %v479 = vrot.slane %v337, 1
        %v480 = vsel %vm362, %v477, %v479
        %v481 = vrot.slane %v335, 2
        %v482 = vrot.slane %v336, 2
        %v483 = vsel %vm403, %v481, %v482
        %v484 = vrot.slane %v337, 2
        %v485 = vsel %vm403, %v482, %v484
        %486 = vrot.lane.b32.xlu0 %v365, 4
        %v487 = vpop.permute.xlu0 %486
        %488 = vrot.lane.b32.xlu0 %v367, 4
        %v489 = vpop.permute.xlu0 %488
        %490 = vrot.lane.b32.xlu0 %v370, 4
        %v491 = vpop.permute.xlu0 %490
        %492 = vrot.lane.b32.xlu0 %v372, 4
        %v493 = vpop.permute.xlu0 %492
        %494 = vrot.lane.b32.xlu0 %v375, 4
        %v495 = vpop.permute.xlu0 %494
        %496 = vrot.lane.b32.xlu0 %v377, 4
        %v497 = vpop.permute.xlu0 %496
        %498 = vrot.lane.b32.xlu0 %v380, 4
        %v499 = vpop.permute.xlu0 %498
        %500 = vrot.lane.b32.xlu0 %v382, 4
        %v501 = vpop.permute.xlu0 %500
        %502 = vrot.lane.b32.xlu0 %v385, 4
        %v503 = vpop.permute.xlu0 %502
        %504 = vrot.lane.b32.xlu0 %v387, 4
        %v505 = vpop.permute.xlu0 %504
        %506 = vrot.lane.b32.xlu0 %v390, 4
        %v507 = vpop.permute.xlu0 %506
        %508 = vrot.lane.b32.xlu0 %v392, 4
        %v509 = vpop.permute.xlu0 %508
        %510 = vrot.lane.b32.xlu0 %v395, 4
        %v511 = vpop.permute.xlu0 %510
        %512 = vrot.lane.b32.xlu0 %v397, 4
        %v513 = vpop.permute.xlu0 %512
        %514 = vrot.lane.b32.xlu0 %v400, 4
        %v515 = vpop.permute.xlu0 %514
        %516 = vrot.lane.b32.xlu0 %v402, 4
        %v517 = vpop.permute.xlu0 %516
        %534 = vrot.lane.b32.xlu0 %v406, 8
        %v535 = vpop.permute.xlu0 %534
        %536 = vrot.lane.b32.xlu0 %v408, 8
        %v537 = vpop.permute.xlu0 %536
        %538 = vrot.lane.b32.xlu0 %v411, 8
        %v539 = vpop.permute.xlu0 %538
        %540 = vrot.lane.b32.xlu0 %v413, 8
        %v541 = vpop.permute.xlu0 %540
        %542 = vrot.lane.b32.xlu0 %v416, 8
        %v543 = vpop.permute.xlu0 %542
        %544 = vrot.lane.b32.xlu0 %v418, 8
        %v545 = vpop.permute.xlu0 %544
        %546 = vrot.lane.b32.xlu0 %v421, 8
        %v547 = vpop.permute.xlu0 %546
        %548 = vrot.lane.b32.xlu0 %v423, 8
        %v549 = vpop.permute.xlu0 %548
        %550 = vrot.lane.b32.xlu0 %v426, 8
        %v551 = vpop.permute.xlu0 %550
        %552 = vrot.lane.b32.xlu0 %v428, 8
        %v553 = vpop.permute.xlu0 %552
        %554 = vrot.lane.b32.xlu0 %v431, 8
        %v555 = vpop.permute.xlu0 %554
        %556 = vrot.lane.b32.xlu0 %v433, 8
        %v557 = vpop.permute.xlu0 %556
        %558 = vrot.lane.b32.xlu0 %v436, 8
        %v559 = vpop.permute.xlu0 %558
        %560 = vrot.lane.b32.xlu0 %v438, 8
        %v561 = vpop.permute.xlu0 %560
        %562 = vrot.lane.b32.xlu0 %v441, 8
        %v563 = vpop.permute.xlu0 %562
        %564 = vrot.lane.b32.xlu0 %v443, 8
        %v565 = vpop.permute.xlu0 %564
        %582 = vrot.lane.b32.xlu0 %v311, 12
        %v583 = vpop.permute.xlu0 %582
        %584 = vrot.lane.b32.xlu0 %v312, 12
        %v585 = vpop.permute.xlu0 %584
        %586 = vrot.lane.b32.xlu0 %v314, 12
        %v587 = vpop.permute.xlu0 %586
        %588 = vrot.lane.b32.xlu0 %v315, 12
        %v589 = vpop.permute.xlu0 %588
        %590 = vrot.lane.b32.xlu0 %v317, 12
        %v591 = vpop.permute.xlu0 %590
        %592 = vrot.lane.b32.xlu0 %v318, 12
        %v593 = vpop.permute.xlu0 %592
        %594 = vrot.lane.b32.xlu0 %v320, 12
        %v595 = vpop.permute.xlu0 %594
        %596 = vrot.lane.b32.xlu0 %v321, 12
        %v597 = vpop.permute.xlu0 %596
        %598 = vrot.lane.b32.xlu0 %v323, 12
        %v599 = vpop.permute.xlu0 %598
        %600 = vrot.lane.b32.xlu0 %v324, 12
        %v601 = vpop.permute.xlu0 %600
        %602 = vrot.lane.b32.xlu0 %v326, 12
        %v603 = vpop.permute.xlu0 %602
        %604 = vrot.lane.b32.xlu0 %v327, 12
        %v605 = vpop.permute.xlu0 %604
        %606 = vrot.lane.b32.xlu0 %v329, 12
        %v607 = vpop.permute.xlu0 %606
        %608 = vrot.lane.b32.xlu0 %v330, 12
        %v609 = vpop.permute.xlu0 %608
        %610 = vrot.lane.b32.xlu0 %v332, 12
        %v611 = vpop.permute.xlu0 %610
        %612 = vrot.lane.b32.xlu0 %v333, 12
        %v613 = vpop.permute.xlu0 %612
        %630 = vrot.lane.b32.xlu0 %v370, 16
        %v631 = vpop.permute.xlu0 %630
        %632 = vrot.lane.b32.xlu0 %v372, 16
        %v633 = vpop.permute.xlu0 %632
        %634 = vrot.lane.b32.xlu0 %v375, 16
        %v635 = vpop.permute.xlu0 %634
        %636 = vrot.lane.b32.xlu0 %v377, 16
        %v637 = vpop.permute.xlu0 %636
        %638 = vrot.lane.b32.xlu0 %v380, 16
        %v639 = vpop.permute.xlu0 %638
        %640 = vrot.lane.b32.xlu0 %v382, 16
        %v641 = vpop.permute.xlu0 %640
        %642 = vrot.lane.b32.xlu0 %v385, 16
        %v643 = vpop.permute.xlu0 %642
        %644 = vrot.lane.b32.xlu0 %v387, 16
        %v645 = vpop.permute.xlu0 %644
        %646 = vrot.lane.b32.xlu0 %v390, 16
        %v647 = vpop.permute.xlu0 %646
        %648 = vrot.lane.b32.xlu0 %v392, 16
        %v649 = vpop.permute.xlu0 %648
        %650 = vrot.lane.b32.xlu0 %v395, 16
        %v651 = vpop.permute.xlu0 %650
        %652 = vrot.lane.b32.xlu0 %v397, 16
        %v653 = vpop.permute.xlu0 %652
        %654 = vrot.lane.b32.xlu0 %v400, 16
        %v655 = vpop.permute.xlu0 %654
        %656 = vrot.lane.b32.xlu0 %v402, 16
        %v657 = vpop.permute.xlu0 %656
        %658 = vrot.lane.b32.xlu0 %v449, 16
        %v659 = vpop.permute.xlu0 %658
        %660 = vrot.lane.b32.xlu0 %v451, 16
        %v661 = vpop.permute.xlu0 %660
        %678 = vrot.lane.b32.xlu0 %v411, 20
        %v679 = vpop.permute.xlu0 %678
        %680 = vrot.lane.b32.xlu0 %v413, 20
        %v681 = vpop.permute.xlu0 %680
        %682 = vrot.lane.b32.xlu0 %v416, 20
        %v683 = vpop.permute.xlu0 %682
        %684 = vrot.lane.b32.xlu0 %v418, 20
        %v685 = vpop.permute.xlu0 %684
        %686 = vrot.lane.b32.xlu0 %v421, 20
        %v687 = vpop.permute.xlu0 %686
        %688 = vrot.lane.b32.xlu0 %v423, 20
        %v689 = vpop.permute.xlu0 %688
        %690 = vrot.lane.b32.xlu0 %v426, 20
        %v691 = vpop.permute.xlu0 %690
        %692 = vrot.lane.b32.xlu0 %v428, 20
        %v693 = vpop.permute.xlu0 %692
        %694 = vrot.lane.b32.xlu0 %v431, 20
        %v695 = vpop.permute.xlu0 %694
        %696 = vrot.lane.b32.xlu0 %v433, 20
        %v697 = vpop.permute.xlu0 %696
        %698 = vrot.lane.b32.xlu0 %v436, 20
        %v699 = vpop.permute.xlu0 %698
        %700 = vrot.lane.b32.xlu0 %v438, 20
        %v701 = vpop.permute.xlu0 %700
        %702 = vrot.lane.b32.xlu0 %v441, 20
        %v703 = vpop.permute.xlu0 %702
        %704 = vrot.lane.b32.xlu0 %v443, 20
        %v705 = vpop.permute.xlu0 %704
        %706 = vrot.lane.b32.xlu0 %v470, 20
        %v707 = vpop.permute.xlu0 %706
        %708 = vrot.lane.b32.xlu0 %v472, 20
        %v709 = vpop.permute.xlu0 %708
        %726 = vrot.lane.b32.xlu0 %v314, 24
        %v727 = vpop.permute.xlu0 %726
        %728 = vrot.lane.b32.xlu0 %v315, 24
        %v729 = vpop.permute.xlu0 %728
        %730 = vrot.lane.b32.xlu0 %v317, 24
        %v731 = vpop.permute.xlu0 %730
        %732 = vrot.lane.b32.xlu0 %v318, 24
        %v733 = vpop.permute.xlu0 %732
        %734 = vrot.lane.b32.xlu0 %v320, 24
        %v735 = vpop.permute.xlu0 %734
        %736 = vrot.lane.b32.xlu0 %v321, 24
        %v737 = vpop.permute.xlu0 %736
        %738 = vrot.lane.b32.xlu0 %v323, 24
        %v739 = vpop.permute.xlu0 %738
        %740 = vrot.lane.b32.xlu0 %v324, 24
        %v741 = vpop.permute.xlu0 %740
        %742 = vrot.lane.b32.xlu0 %v326, 24
        %v743 = vpop.permute.xlu0 %742
        %744 = vrot.lane.b32.xlu0 %v327, 24
        %v745 = vpop.permute.xlu0 %744
        %746 = vrot.lane.b32.xlu0 %v329, 24
        %v747 = vpop.permute.xlu0 %746
        %748 = vrot.lane.b32.xlu0 %v330, 24
        %v749 = vpop.permute.xlu0 %748
        %750 = vrot.lane.b32.xlu0 %v332, 24
        %v751 = vpop.permute.xlu0 %750
        %752 = vrot.lane.b32.xlu0 %v333, 24
        %v753 = vpop.permute.xlu0 %752
        %754 = vrot.lane.b32.xlu0 %v335, 24
        %v755 = vpop.permute.xlu0 %754
        %756 = vrot.lane.b32.xlu0 %v336, 24
        %v757 = vpop.permute.xlu0 %756
        %774 = vrot.lane.b32.xlu0 %v375, 28
        %v775 = vpop.permute.xlu0 %774
        %776 = vrot.lane.b32.xlu0 %v377, 28
        %v777 = vpop.permute.xlu0 %776
        %778 = vrot.lane.b32.xlu0 %v380, 28
        %v779 = vpop.permute.xlu0 %778
        %780 = vrot.lane.b32.xlu0 %v382, 28
        %v781 = vpop.permute.xlu0 %780
        %782 = vrot.lane.b32.xlu0 %v385, 28
        %v783 = vpop.permute.xlu0 %782
        %784 = vrot.lane.b32.xlu0 %v387, 28
        %v785 = vpop.permute.xlu0 %784
        %786 = vrot.lane.b32.xlu0 %v390, 28
        %v787 = vpop.permute.xlu0 %786
        %788 = vrot.lane.b32.xlu0 %v392, 28
        %v789 = vpop.permute.xlu0 %788
        %790 = vrot.lane.b32.xlu0 %v395, 28
        %v791 = vpop.permute.xlu0 %790
        %792 = vrot.lane.b32.xlu0 %v397, 28
        %v793 = vpop.permute.xlu0 %792
        %794 = vrot.lane.b32.xlu0 %v400, 28
        %v795 = vpop.permute.xlu0 %794
        %796 = vrot.lane.b32.xlu0 %v402, 28
        %v797 = vpop.permute.xlu0 %796
        %798 = vrot.lane.b32.xlu0 %v449, 28
        %v799 = vpop.permute.xlu0 %798
        %800 = vrot.lane.b32.xlu0 %v451, 28
        %v801 = vpop.permute.xlu0 %800
        %802 = vrot.lane.b32.xlu0 %v478, 28
        %v803 = vpop.permute.xlu0 %802
        %804 = vrot.lane.b32.xlu0 %v480, 28
        %v805 = vpop.permute.xlu0 %804
        %822 = vrot.lane.b32.xlu0 %v416, 32
        %v823 = vpop.permute.xlu0 %822
        %824 = vrot.lane.b32.xlu0 %v418, 32
        %v825 = vpop.permute.xlu0 %824
        %826 = vrot.lane.b32.xlu0 %v421, 32
        %v827 = vpop.permute.xlu0 %826
        %828 = vrot.lane.b32.xlu0 %v423, 32
        %v829 = vpop.permute.xlu0 %828
        %830 = vrot.lane.b32.xlu0 %v426, 32
        %v831 = vpop.permute.xlu0 %830
        %832 = vrot.lane.b32.xlu0 %v428, 32
        %v833 = vpop.permute.xlu0 %832
        %834 = vrot.lane.b32.xlu0 %v431, 32
        %v835 = vpop.permute.xlu0 %834
        %836 = vrot.lane.b32.xlu0 %v433, 32
        %v837 = vpop.permute.xlu0 %836
        %838 = vrot.lane.b32.xlu0 %v436, 32
        %v839 = vpop.permute.xlu0 %838
        %840 = vrot.lane.b32.xlu0 %v438, 32
        %v841 = vpop.permute.xlu0 %840
        %842 = vrot.lane.b32.xlu0 %v441, 32
        %v843 = vpop.permute.xlu0 %842
        %844 = vrot.lane.b32.xlu0 %v443, 32
        %v845 = vpop.permute.xlu0 %844
        %846 = vrot.lane.b32.xlu0 %v470, 32
        %v847 = vpop.permute.xlu0 %846
        %848 = vrot.lane.b32.xlu0 %v472, 32
        %v849 = vpop.permute.xlu0 %848
        %850 = vrot.lane.b32.xlu0 %v483, 32
        %v851 = vpop.permute.xlu0 %850
        %852 = vrot.lane.b32.xlu0 %v485, 32
        %v853 = vpop.permute.xlu0 %852
        %vm870 = vcmask 31744
        %v871 = vsel %vm870, %v308, %v487
        %v872 = vsel %vm870, %v309, %v489
        %v873 = vsel %vm870, %v311, %v491
        %v874 = vsel %vm870, %v312, %v493
        %v875 = vsel %vm870, %v314, %v495
        %v876 = vsel %vm870, %v315, %v497
        %v877 = vsel %vm870, %v317, %v499
        %v878 = vsel %vm870, %v318, %v501
        %v879 = vsel %vm870, %v320, %v503
        %v880 = vsel %vm870, %v321, %v505
        %v881 = vsel %vm870, %v323, %v507
        %v882 = vsel %vm870, %v324, %v509
        %v883 = vsel %vm870, %v326, %v511
        %v884 = vsel %vm870, %v327, %v513
        %v885 = vsel %vm870, %v329, %v515
        %v886 = vsel %vm870, %v330, %v517
        %vm887 = vcmask 64512
        %v888 = vsel %vm887, %v871, %v535
        %v889 = vsel %vm887, %v872, %v537
        %v890 = vsel %vm887, %v873, %v539
        %v891 = vsel %vm887, %v874, %v541
        %v892 = vsel %vm887, %v875, %v543
        %v893 = vsel %vm887, %v876, %v545
        %v894 = vsel %vm887, %v877, %v547
        %v895 = vsel %vm887, %v878, %v549
        %v896 = vsel %vm887, %v879, %v551
        %v897 = vsel %vm887, %v880, %v553
        %v898 = vsel %vm887, %v881, %v555
        %v899 = vsel %vm887, %v882, %v557
        %v900 = vsel %vm887, %v883, %v559
        %v901 = vsel %vm887, %v884, %v561
        %v902 = vsel %vm887, %v885, %v563
        %v903 = vsel %vm887, %v886, %v565
        %vm904 = vcmask 97280
        %v905 = vsel %vm904, %v888, %v583
        %v906 = vsel %vm904, %v889, %v585
        %v907 = vsel %vm904, %v890, %v587
        %v908 = vsel %vm904, %v891, %v589
        %v909 = vsel %vm904, %v892, %v591
        %v910 = vsel %vm904, %v893, %v593
        %v911 = vsel %vm904, %v894, %v595
        %v912 = vsel %vm904, %v895, %v597
        %v913 = vsel %vm904, %v896, %v599
        %v914 = vsel %vm904, %v897, %v601
        %v915 = vsel %vm904, %v898, %v603
        %v916 = vsel %vm904, %v899, %v605
        %v917 = vsel %vm904, %v900, %v607
        %v918 = vsel %vm904, %v901, %v609
        %v919 = vsel %vm904, %v902, %v611
        %v920 = vsel %vm904, %v903, %v613
        %vm921 = vcmask 130048
        %v922 = vsel %vm921, %v905, %v631
        %v923 = vsel %vm921, %v906, %v633
        %v924 = vsel %vm921, %v907, %v635
        %v925 = vsel %vm921, %v908, %v637
        %v926 = vsel %vm921, %v909, %v639
        %v927 = vsel %vm921, %v910, %v641
        %v928 = vsel %vm921, %v911, %v643
        %v929 = vsel %vm921, %v912, %v645
        %v930 = vsel %vm921, %v913, %v647
        %v931 = vsel %vm921, %v914, %v649
        %v932 = vsel %vm921, %v915, %v651
        %v933 = vsel %vm921, %v916, %v653
        %v934 = vsel %vm921, %v917, %v655
        %v935 = vsel %vm921, %v918, %v657
        %v936 = vsel %vm921, %v919, %v659
        %v937 = vsel %vm921, %v920, %v661
        %vm938 = vcmask 162816
        %v939 = vsel %vm938, %v922, %v679
        %v940 = vsel %vm938, %v923, %v681
        %v941 = vsel %vm938, %v924, %v683
        %v942 = vsel %vm938, %v925, %v685
        %v943 = vsel %vm938, %v926, %v687
        %v944 = vsel %vm938, %v927, %v689
        %v945 = vsel %vm938, %v928, %v691
        %v946 = vsel %vm938, %v929, %v693
        %v947 = vsel %vm938, %v930, %v695
        %v948 = vsel %vm938, %v931, %v697
        %v949 = vsel %vm938, %v932, %v699
        %v950 = vsel %vm938, %v933, %v701
        %v951 = vsel %vm938, %v934, %v703
        %v952 = vsel %vm938, %v935, %v705
        %v953 = vsel %vm938, %v936, %v707
        %v954 = vsel %vm938, %v937, %v709
        %vm955 = vcmask 195584
        %v956 = vsel %vm955, %v939, %v727
        %v957 = vsel %vm955, %v940, %v729
        %v958 = vsel %vm955, %v941, %v731
        %v959 = vsel %vm955, %v942, %v733
        %v960 = vsel %vm955, %v943, %v735
        %v961 = vsel %vm955, %v944, %v737
        %v962 = vsel %vm955, %v945, %v739
        %v963 = vsel %vm955, %v946, %v741
        %v964 = vsel %vm955, %v947, %v743
        %v965 = vsel %vm955, %v948, %v745
        %v966 = vsel %vm955, %v949, %v747
        %v967 = vsel %vm955, %v950, %v749
        %v968 = vsel %vm955, %v951, %v751
        %v969 = vsel %vm955, %v952, %v753
        %v970 = vsel %vm955, %v953, %v755
        %v971 = vsel %vm955, %v954, %v757
        %vm972 = vcmask 228352
        %v973 = vsel %vm972, %v956, %v775
        %v974 = vsel %vm972, %v957, %v777
        %v975 = vsel %vm972, %v958, %v779
        %v976 = vsel %vm972, %v959, %v781
        %v977 = vsel %vm972, %v960, %v783
        %v978 = vsel %vm972, %v961, %v785
        %v979 = vsel %vm972, %v962, %v787
        %v980 = vsel %vm972, %v963, %v789
        %v981 = vsel %vm972, %v964, %v791
        %v982 = vsel %vm972, %v965, %v793
        %v983 = vsel %vm972, %v966, %v795
        %v984 = vsel %vm972, %v967, %v797
        %v985 = vsel %vm972, %v968, %v799
        %v986 = vsel %vm972, %v969, %v801
        %v987 = vsel %vm972, %v970, %v803
        %v988 = vsel %vm972, %v971, %v805
        %vm989 = vcmask 261120
        %v990 = vsel %vm989, %v973, %v823
        %v991 = vsel %vm989, %v974, %v825
        %v992 = vsel %vm989, %v975, %v827
        %v993 = vsel %vm989, %v976, %v829
        %v994 = vsel %vm989, %v977, %v831
        %v995 = vsel %vm989, %v978, %v833
        %v996 = vsel %vm989, %v979, %v835
        %v997 = vsel %vm989, %v980, %v837
        %v998 = vsel %vm989, %v981, %v839
        %v999 = vsel %vm989, %v982, %v841
        %v1000 = vsel %vm989, %v983, %v843
        %v1001 = vsel %vm989, %v984, %v845
        %v1002 = vsel %vm989, %v985, %v847
        %v1003 = vsel %vm989, %v986, %v849
        %v1004 = vsel %vm989, %v987, %v851
        %v1005 = vsel %vm989, %v988, %v853
        %v1006 = vpack.c.bf16 %v991, %v990
        %v1007 = vpack.c.bf16 %v993, %v992
        %v1008 = vpack.c.bf16 %v995, %v994
        %v1009 = vpack.c.bf16 %v997, %v996
        %v1010 = vpack.c.bf16 %v999, %v998
        %v1011 = vpack.c.bf16 %v1001, %v1000
        %v1012 = vpack.c.bf16 %v1003, %v1002
        %v1013 = vpack.c.bf16 %v1005, %v1004
        %v1014 = vld [vmem:[%s1] sm:$0xf]
        %v1015 = vld [vmem:[%s1 + $0x4] sm:$0xf]
        %v1016 = vld [vmem:[%s1 + $0x8] sm:$0xf]
        %v1017 = vld [vmem:[%s1 + $0xc] sm:$0xf]
        %v1018 = vld [vmem:[%s1 + $0x10] sm:$0x3]
        %v1019 = vld [vmem:[%s2] sm:$0x1]
        %v1021 = vlaneseq
        %v1022 = vshrl.u32 %v1021, 7
        %v1023 = vsub.s32 0, %v1022
        %v1024 = vrot.slane %v1019, %v1023
        %v1031 = vunpack.c.l.b16 %v1014
        %v1032 = vunpack.c.l.b16 %v1015
        %v1033 = vunpack.c.l.b16 %v1016
        %v1034 = vunpack.c.l.b16 %v1017
        %v1035 = vunpack.c.l.b16 %v1018
        %v1036 = vpack.c.b16 %v1032, %v1031
        %v1037 = vpack.c.b16 %v1034, %v1033
        %v1038 = vpack.c.b16 %v1035, %v1035
        %vm1041 = vcmask 293888
        %v1043 = vsel %vm1041, %v1006, 0
        %v1046 = vsel %vm1041, %v1007, 0
        %v1049 = vsel %vm1041, %v1008, 0
        %v1052 = vsel %vm1041, %v1009, 0
        %v1055 = vsel %vm1041, %v1010, 0
        %v1058 = vsel %vm1041, %v1011, 0
        %v1061 = vsel %vm1041, %v1012, 0
        %v1064 = vsel %vm1041, %v1013, 0
        %vm1066 = vcmask 1041408
        %v1068 = vsel %vm1066, %v1038, 0
        %1070 = vmatprep.subr.bf16.mxu0 0
        %1071 = vmatpush1.bf16.msra.mxu0 0
        %1072 = vmatprep.subr.bf16.mxu0 0
        %1073 = vmatpush1.bf16.msra.mxu0 0
        %1074 = vmatprep.subr.bf16.mxu0 0
        %1075 = vmatpush1.bf16.msra.mxu0 0
        %1076 = vmatprep.subr.bf16.mxu0 0
        %1077 = vmatpush1.bf16.msra.mxu0 0
        %1078 = vmatprep.subr.bf16.mxu0 0
        %1079 = vmatpush1.bf16.msra.mxu0 0
        %1080 = vmatprep.subr.bf16.mxu0 0
        %1081 = vmatpush1.bf16.msra.mxu0 %v1068
        %1082 = vmatprep.subr.bf16.mxu0 0
        %1083 = vmatpush1.bf16.msra.mxu0 %v1037
        %1084 = vmatprep.subr.bf16.mxu0 0
        %1085 = vmatpush1.bf16.msra.mxu0 %v1036
        %1086 = vmatprep.subr.bf16.mxu0 0
        %1087 = vmatpush2.bf16.msra.mxu0 0
        %1088 = vmatprep.subr.bf16.mxu0 0
        %1089 = vmatpush2.bf16.msra.mxu0 0
        %1090 = vmatprep.subr.bf16.mxu0 0
        %1091 = vmatpush2.bf16.msra.mxu0 0
        %1092 = vmatprep.subr.bf16.mxu0 0
        %1093 = vmatpush2.bf16.msra.mxu0 0
        %1094 = vmatprep.subr.bf16.mxu0 0
        %1095 = vmatpush2.bf16.msra.mxu0 0
        %1096 = vmatprep.subr.bf16.mxu0 0
        %1097 = vmatpush2.bf16.msra.mxu0 0
        %1098 = vmatprep.subr.bf16.mxu0 0
        %1099 = vmatpush2.bf16.msra.mxu0 0
        %1100 = vmatprep.subr.bf16.mxu0 0
        %1101 = vmatpush2.bf16.msra.mxu0 0
        %1102 = vmatprep.mubr.bf16.mxu0 0
        %1103 = vmatmul.mubr.bf16.gmra.mxu0 %v1043
        %v1104 = vpop.f32.mrf.mxu0
        %v1105 = vadd.f32 %v1024, %v1104
        %v1106 = vpop.f32.mrf.mxu0
        %v1107 = vpop.f32.mrf.mxu0
        %v1108 = vadd.f32 %v1024, %v1107
        %v1109 = vpop.f32.mrf.mxu0
        %1110 = vmatprep.mubr.bf16.mxu0 0
        %1111 = vmatmul.mubr.bf16.gmra.mxu0 %v1046
        %v1112 = vpop.f32.mrf.mxu0
        %v1113 = vadd.f32 %v1024, %v1112
        %v1114 = vpop.f32.mrf.mxu0
        %v1115 = vpop.f32.mrf.mxu0
        %v1116 = vadd.f32 %v1024, %v1115
        %v1117 = vpop.f32.mrf.mxu0
        %1118 = vmatprep.mubr.bf16.mxu0 0
        %1119 = vmatmul.mubr.bf16.gmra.mxu0 %v1049
        %v1120 = vpop.f32.mrf.mxu0
        %v1121 = vadd.f32 %v1024, %v1120
        %v1122 = vpop.f32.mrf.mxu0
        %v1123 = vpop.f32.mrf.mxu0
        %v1124 = vadd.f32 %v1024, %v1123
        %v1125 = vpop.f32.mrf.mxu0
        %1126 = vmatprep.mubr.bf16.mxu0 0
        %1127 = vmatmul.mubr.bf16.gmra.mxu0 %v1052
        %v1128 = vpop.f32.mrf.mxu0
        %v1129 = vadd.f32 %v1024, %v1128
        %v1130 = vpop.f32.mrf.mxu0
        %v1131 = vpop.f32.mrf.mxu0
        %v1132 = vadd.f32 %v1024, %v1131
        %v1133 = vpop.f32.mrf.mxu0
        %1134 = vmatprep.mubr.bf16.mxu0 0
        %1135 = vmatmul.mubr.bf16.gmra.mxu0 %v1055
        %v1136 = vpop.f32.mrf.mxu0
        %v1137 = vadd.f32 %v1024, %v1136
        %v1138 = vpop.f32.mrf.mxu0
        %v1139 = vpop.f32.mrf.mxu0
        %v1140 = vadd.f32 %v1024, %v1139
        %v1141 = vpop.f32.mrf.mxu0
        %1142 = vmatprep.mubr.bf16.mxu0 0
        %1143 = vmatmul.mubr.bf16.gmra.mxu0 %v1058
        %v1144 = vpop.f32.mrf.mxu0
        %v1145 = vadd.f32 %v1024, %v1144
        %v1146 = vpop.f32.mrf.mxu0
        %v1147 = vpop.f32.mrf.mxu0
        %v1148 = vadd.f32 %v1024, %v1147
        %v1149 = vpop.f32.mrf.mxu0
        %1150 = vmatprep.mubr.bf16.mxu0 0
        %1151 = vmatmul.mubr.bf16.gmra.mxu0 %v1061
        %v1152 = vpop.f32.mrf.mxu0
        %v1153 = vadd.f32 %v1024, %v1152
        %v1154 = vpop.f32.mrf.mxu0
        %v1155 = vpop.f32.mrf.mxu0
        %v1156 = vadd.f32 %v1024, %v1155
        %v1157 = vpop.f32.mrf.mxu0
        %1158 = vmatprep.mubr.bf16.mxu0 0
        %1159 = vmatmul.mubr.bf16.gmra.mxu0 %v1064
        %v1160 = vpop.f32.mrf.mxu0
        %v1161 = vadd.f32 %v1024, %v1160
        %v1162 = vpop.f32.mrf.mxu0
        %v1163 = vpop.f32.mrf.mxu0
        %v1164 = vadd.f32 %v1024, %v1163
        %v1165 = vpop.f32.mrf.mxu0
        %1166 = vdwg.mxu0
        %v1167 = vmax.f32 %v1105, 0.0
        %v1168 = vmax.f32 %v1108, 0.0
        %v1169 = vmax.f32 %v1113, 0.0
        %v1170 = vmax.f32 %v1116, 0.0
        %v1171 = vmax.f32 %v1121, 0.0
        %v1172 = vmax.f32 %v1124, 0.0
        %v1173 = vmax.f32 %v1129, 0.0
        %v1174 = vmax.f32 %v1132, 0.0
        %v1175 = vmax.f32 %v1137, 0.0
        %v1176 = vmax.f32 %v1140, 0.0
        %v1177 = vmax.f32 %v1145, 0.0
        %v1178 = vmax.f32 %v1148, 0.0
        %v1179 = vmax.f32 %v1153, 0.0
        %v1180 = vmax.f32 %v1156, 0.0
        %v1181 = vmax.f32 %v1161, 0.0
        %v1182 = vmax.f32 %v1164, 0.0
        %1183 = vxpose.xlu0.b32.start [1/16] %v370, 128
        %1184 = vxpose.xlu0.b32.cont [2/16] %v372, 128
        %1185 = vxpose.xlu0.b32.cont [3/16] %v375, 128
        %1186 = vxpose.xlu0.b32.cont [4/16] %v377, 128
        %1187 = vxpose.xlu0.b32.cont [5/16] %v380, 128
        %1188 = vxpose.xlu0.b32.cont [6/16] %v382, 128
        %1189 = vxpose.xlu0.b32.cont [7/16] %v385, 128
        %1190 = vxpose.xlu0.b32.cont [8/16] %v387, 128
        %1191 = vxpose.xlu0.b32.cont [9/16] %v390, 128
        %1192 = vxpose.xlu0.b32.cont [10/16] %v392, 128
        %1193 = vxpose.xlu0.b32.cont [11/16] %v395, 128
        %1194 = vxpose.xlu0.b32.cont [12/16] %v397, 128
        %1195 = vxpose.xlu0.b32.cont [13/16] %v400, 128
        %1196 = vxpose.xlu0.b32.cont [14/16] %v402, 128
        %1197 = vxpose.xlu0.b32.cont [15/16] %v449, 128
        %1198 = vxpose.xlu0.b32.end [16/16] %v451, 128
        %v1199 = vpop.trf.xlu0
        %v1200 = vpop.trf.xlu0
        %v1201 = vpop.trf.xlu0
        %v1202 = vpop.trf.xlu0
        %v1203 = vpop.trf.xlu0
        %v1204 = vpop.trf.xlu0
        %v1205 = vpop.trf.xlu0
        %v1206 = vpop.trf.xlu0
        %v1207 = vpop.trf.xlu0
        %v1208 = vpop.trf.xlu0
        %v1209 = vpop.trf.xlu0
        %v1210 = vpop.trf.xlu0
        %v1211 = vpop.trf.xlu0
        %v1212 = vpop.trf.xlu0
        %v1213 = vpop.trf.xlu0
        %v1214 = vpop.trf.xlu0
        %1215 = vst [vmem:[%s173] sm:$0xf] %v1199
        %1216 = vxpose.xlu0.b32.start [1/16] %v1167, 128
        %1217 = vxpose.xlu0.b32.cont [2/16] %v1168, 128
        %1218 = vxpose.xlu0.b32.cont [3/16] %v1169, 128
        %1219 = vxpose.xlu0.b32.cont [4/16] %v1170, 128
        %1220 = vxpose.xlu0.b32.cont [5/16] %v1171, 128
        %1221 = vxpose.xlu0.b32.cont [6/16] %v1172, 128
        %1222 = vxpose.xlu0.b32.cont [7/16] %v1173, 128
        %1223 = vxpose.xlu0.b32.cont [8/16] %v1174, 128
        %1224 = vxpose.xlu0.b32.cont [9/16] %v1175, 128
        %1225 = vxpose.xlu0.b32.cont [10/16] %v1176, 128
        %1226 = vxpose.xlu0.b32.cont [11/16] %v1177, 128
        %1227 = vxpose.xlu0.b32.cont [12/16] %v1178, 128
        %1228 = vxpose.xlu0.b32.cont [13/16] %v1179, 128
        %1229 = vxpose.xlu0.b32.cont [14/16] %v1180, 128
        %1230 = vxpose.xlu0.b32.cont [15/16] %v1181, 128
        %1231 = vxpose.xlu0.b32.end [16/16] %v1182, 128
        %v1232 = vpop.trf.xlu0
        %v1233 = vpop.trf.xlu0
        %v1234 = vpop.trf.xlu0
        %v1235 = vpop.trf.xlu0
        %v1236 = vpop.trf.xlu0
        %v1237 = vpop.trf.xlu0
        %v1238 = vpop.trf.xlu0
        %v1239 = vpop.trf.xlu0
        %v1240 = vpop.trf.xlu0
        %v1241 = vpop.trf.xlu0
        %v1242 = vpop.trf.xlu0
        %v1243 = vpop.trf.xlu0
        %v1244 = vpop.trf.xlu0
        %v1245 = vpop.trf.xlu0
        %v1246 = vpop.trf.xlu0
        %v1247 = vpop.trf.xlu0
        %1248 = vst [vmem:[%s173 + $0x4] sm:$0xff] %v1232
        %1249 = vst [vmem:[%s173 + $0xc] sm:$0xff] %v1233
        %1250 = vst [vmem:[%s173 + $0x14] sm:$0xff] %v1234
        %1251 = vst [vmem:[%s173 + $0x1c] sm:$0xff] %v1235
        %s1252 = sand.u32 %s104, 1
        %s1253 = sand.u32 %s104, 1
        %s1254 = smul.addr %s1253, 40
        %s1255 = scalar_lea.vmem [#allocation3], %s1254
        // Predicated region
        $region37: #{dense_layer_forward.1} parent=31 // pred_check
          %p1256 = pneg %p114
        $region38: #{dense_layer_forward.1} parent=31 // pred_check_branch
          %1258 = sbr.rel (%p1256) target = $region40
        $region39: #{dense_layer_forward.1} parent=31 // pred_region
          %s1259 = smul.addr %s18, 10
          %s1260 = sadd.s32 %s19, %s1259
          %s1261 = smul.addr %s1260, 8
          %s1262 = scalar_lea.vmem %s3, %s1261
          // Predicated region
          $region41: #{dense_layer_forward.1} parent=39 // pred_check
            _
          $region42: #{dense_layer_forward.1} parent=39 // pred_check_branch
            %1264 = sbr.rel (0) target = $region44
          $region43: #{dense_layer_forward.1} parent=39 // pred_region
            // Predicated region
            $region45: #{dense_layer_forward.1} parent=43 // pred_check
              _
            $region46: #{dense_layer_forward.1} parent=43 // pred_check_branch
              %1266 = sbr.rel (0) target = $region48
            $region47: #{dense_layer_forward.1} parent=43 // pred_region
              // Predicated region
              $region60: #{dense_layer_forward.1} parent=47 // pred_check
                _
              $region61: #{dense_layer_forward.1} parent=47 // pred_check_branch
                %1290 = sbr.rel (0) target = $region63
              $region62: #{dense_layer_forward.1} parent=47 // pred_region
                loop: start=0, step=1, limit=1
                $region64: #{dense_layer_forward.1} parent=62 // loop_pre_header
                  _
                $region65: #{dense_layer_forward.1} parent=62 // loop_header
                  %s1292 = sphi 0, %s1296
                  %p1293 = scmp.ge.s32.totalorder %s1292, 1
                  %s1297 = sphi %s1255, %s1255
                  %s1298 = sphi %s1262, %s1262
                $region66: #{dense_layer_forward.1} parent=62 // loop_header_branch
                  %1295 = sbr.rel (%p1293) target = $region70
                $region67: #{dense_layer_forward.1} parent=62 // loop_body
                  %v1299 = vld [vmem:[%s1297] sm:$0xff]
                  %1300 = vst [vmem:[%s1298] sm:$0xff] %v1299
                  %v1301 = vld [vmem:[%s1297 + $0x8] sm:$0xff]
                  %1302 = vst [vmem:[%s1298 + $0x10] sm:$0xff] %v1301
                  %v1303 = vld [vmem:[%s1297 + $0x10] sm:$0xff]
                  %1304 = vst [vmem:[%s1298 + $0x20] sm:$0xff] %v1303
                  %v1305 = vld [vmem:[%s1297 + $0x18] sm:$0xff]
                  %1306 = vst [vmem:[%s1298 + $0x30] sm:$0xff] %v1305
                  %v1307 = vld [vmem:[%s1297 + $0x20] sm:$0xff]
                  %1308 = vst [vmem:[%s1298 + $0x40] sm:$0xff] %v1307
                $region68: #{dense_layer_forward.1} parent=62 // loop_footer
                  %s1296 = sadd.s32 1, %s1292
                $region69: #{dense_layer_forward.1} parent=62 // loop_footer_branch
                  %1291 = sbr.rel target = $region65
                $region70: #{dense_layer_forward.1} parent=62 // loop_exit
                  _
              $region63: #{dense_layer_forward.1} parent=47 // pred_fallthru
                _
              // Predicated region
              $region71: #{dense_layer_forward.1} parent=47 // pred_check
                _
              $region72: #{dense_layer_forward.1} parent=47 // pred_check_branch
                %1310 = sbr.rel target = $region74
              $region73: #{dense_layer_forward.1} parent=47 // pred_region
                _
              $region74: #{dense_layer_forward.1} parent=47 // pred_fallthru
                _
            $region48: #{dense_layer_forward.1} parent=43 // pred_fallthru
              _
            // Predicated region
            $region49: #{dense_layer_forward.1} parent=43 // pred_check
              _
            $region50: #{dense_layer_forward.1} parent=43 // pred_check_branch
              %1268 = sbr.rel target = $region52
            $region51: #{dense_layer_forward.1} parent=43 // pred_region
              %s1270 = ssub.s32 256, 1
              loop: start=0, step=1, limit=1
              $region53: #{dense_layer_forward.1} parent=51 // loop_pre_header
                _
              $region54: #{dense_layer_forward.1} parent=51 // loop_header
                %s1272 = sphi 0, %s1276
                %p1273 = scmp.ge.s32.totalorder %s1272, 1
                %s1277 = sphi %s1255, %s1255
                %s1278 = sphi %s1262, %s1262
              $region55: #{dense_layer_forward.1} parent=51 // loop_header_branch
                %1275 = sbr.rel (%p1273) target = $region59
              $region56: #{dense_layer_forward.1} parent=51 // loop_body
                %v1279 = vld [vmem:[%s1277] sm:%s1270]
                %1280 = vst [vmem:[%s1278] sm:%s1270] %v1279
                %v1281 = vld [vmem:[%s1277 + $0x8] sm:%s1270]
                %1282 = vst [vmem:[%s1278 + $0x10] sm:%s1270] %v1281
                %v1283 = vld [vmem:[%s1277 + $0x10] sm:%s1270]
                %1284 = vst [vmem:[%s1278 + $0x20] sm:%s1270] %v1283
                %v1285 = vld [vmem:[%s1277 + $0x18] sm:%s1270]
                %1286 = vst [vmem:[%s1278 + $0x30] sm:%s1270] %v1285
                %v1287 = vld [vmem:[%s1277 + $0x20] sm:%s1270]
                %1288 = vst [vmem:[%s1278 + $0x40] sm:%s1270] %v1287
              $region57: #{dense_layer_forward.1} parent=51 // loop_footer
                %s1276 = sadd.s32 1, %s1272
              $region58: #{dense_layer_forward.1} parent=51 // loop_footer_branch
                %1271 = sbr.rel target = $region54
              $region59: #{dense_layer_forward.1} parent=51 // loop_exit
                _
            $region52: #{dense_layer_forward.1} parent=43 // pred_fallthru
              _
          $region44: #{dense_layer_forward.1} parent=39 // pred_fallthru
            _
          %1311 = vnop
        $region40: #{dense_layer_forward.1} parent=31 // pred_fallthru
          _
      $region32: #{dense_layer_forward.1} parent=5 // pred_fallthru
        _
      %p1312 = scmp.le.s32.totalorder 2, %s9
      // Predicated region
      $region75: #{dense_layer_forward.1} parent=5 // pred_check
        %p1313 = pneg %p1312
      $region76: #{dense_layer_forward.1} parent=5 // pred_check_branch
        %1315 = sbr.rel (%p1313) target = $region78
      $region77: #{dense_layer_forward.1} parent=5 // pred_region
        %s1316 = ssub.s32 %s9, 2
        // Predicated region
        $region79: #{dense_layer_forward.1} parent=77 // pred_check
          %p1317 = pneg %p120
        $region80: #{dense_layer_forward.1} parent=77 // pred_check_branch
          %1319 = sbr.rel (%p1317) target = $region82
        $region81: #{dense_layer_forward.1} parent=77 // pred_region
          %s1320 = sand.u32 %s105, 1
          %s1321 = sand.u32 %s105, 1
          %s1322 = smul.addr %s1321, 40
          %s1323 = scalar_lea.vmem [#allocation3], %s1322
        $region82: #{dense_layer_forward.1} parent=77 // pred_fallthru
          _
      $region78: #{dense_layer_forward.1} parent=5 // pred_fallthru
        _
    $region6: #{dense_layer_forward.1} parent=1 // loop_footer
      %s13 = sadd.s32 1, %s9
    $region7: #{dense_layer_forward.1} parent=1 // loop_footer_branch
      %8 = sbr.rel target = $region3
    $region8: #{dense_layer_forward.1} parent=1 // loop_exit
      _

</llo_original>
